<compile_context>
chip_gen: v7x
topology: tpu7x:2x2x1
jax: 0.10.0
libtpu: 0.0.40
codegen_flags: <defaults>
</compile_context>

<pallas_src>
import functools
import numpy as np
import jax
import jax.numpy as jnp
from jax import lax
from jax.experimental import pallas as pl
from jax.experimental.pallas import tpu as pltpu

G_LOGICAL = 200            # AttentiveFP graph_feat_size
G_PAD = 256                # padded to MXU/vreg-native width
RIDE_COL_A = 200           # spare padded columns carrying ride-along logit scalars
RIDE_COL_B = 201
_MAX_TILE_M = 512
_MIN_SPLIT_M = 16          # below this don't force a 2-way grid split
_VMEM_LIMIT = 32 * 1024 * 1024


# ----------------------------- row-grid plumbing -----------------------------

def _round_up(x, m):
    return ((x + m - 1) // m) * m


def _row_plan(M):
    """(padded_M, tile_M, num_tiles); guarantees >=2 tiles when M > _MIN_SPLIT_M
    so dimension_semantics=('parallel',) can shard rows across v7x's 2 TCs."""
    M = max(int(M), 1)
    if M <= _MIN_SPLIT_M:
        tm = _round_up(M, 8)
        return tm, tm, 1
    tm = min(_MAX_TILE_M, _round_up(pl.cdiv(M, 2), 8))
    ntiles = pl.cdiv(M, tm)
    return ntiles * tm, tm, ntiles


def _pad_rows(x, Mp):
    M = x.shape[0]
    return x if M == Mp else jnp.pad(x, ((0, Mp - M), (0, 0)))


def _call_rowwise(kernel_fn, row_inputs, const_inputs, out_widths, M, cost_estimate=None):
    """Row-grid pallas_call: row_inputs tiled over M, const_inputs (2-D weights /
    (1,N) biases) resident across grid steps, outputs tiled over M."""
    Mp, tm, ntiles = _row_plan(M)
    row_in = [_pad_rows(x, Mp) for x in row_inputs]
    in_specs = [pl.BlockSpec((tm, x.shape[1]), lambda i: (i, 0)) for x in row_in]
    in_specs += [pl.BlockSpec(c.shape, lambda i: (0, 0)) for c in const_inputs]
    out_shapes = tuple(jax.ShapeDtypeStruct((Mp, w), jnp.float32) for w in out_widths)
    out_specs = tuple(pl.BlockSpec((tm, w), lambda i: (i, 0)) for w in out_widths)
    single = len(out_widths) == 1
    outs = pl.pallas_call(
        kernel_fn,
        grid=(ntiles,),
        out_shape=out_shapes[0] if single else out_shapes,
        in_specs=in_specs,
        out_specs=out_specs[0] if single else out_specs,
        compiler_params=pltpu.CompilerParams(
            dimension_semantics=("parallel",),
            vmem_limit_bytes=_VMEM_LIMIT),
        cost_estimate=cost_estimate,
    )(*row_in, *const_inputs)
    if single:
        return outs[:M]
    return tuple(o[:M] for o in outs)


# ----------------------------- kernel helpers -----------------------------

def _apply_act(y, act):
    if act == "relu":
        return jnp.maximum(y, 0.0)
    if act == "leaky_relu":
        return jnp.where(y > 0, y, 0.01 * y)
    return y


def _bdot(x, w):
    # bf16 MXU matmul with f32 accumulation (w is stored bf16; f32 w stays f32).
    return jnp.dot(x.astype(w.dtype), w, preferred_element_type=jnp.float32)


def _put_cols(y, cols_vals):
    # Fold (tm,1) ride-along scalars into spare padded lanes of a wide output.
    idx = lax.broadcasted_iota(jnp.int32, y.shape, 1)
    for col, val in cols_vals:
        y = jnp.where(idx == col, val, y)
    return y


def _leaky_relu(x):
    return jnp.where(x > 0, x, 0.01 * x)


# ----------------------------- Pallas kernels -----------------------------

def _proj_node_kernel(nf_ref, w_ref, b_ref, w2a_ref, o_ref):
    # GetContext.project_node (leaky_relu) + ride-along t_a = hv_new . w2a (VPU+XLU).
    hv = _apply_act(_bdot(nf_ref[...], w_ref[...]) + b_ref[...], "leaky_relu")
    t_a = jnp.sum(hv * w2a_ref[...], axis=1, keepdims=True)
    o_ref[...] = _put_cols(hv, [(RIDE_COL_A, t_a)])


def _edge_init_kernel(nfs_ref, ef_ref, w1a_ref, w1b_ref, b1_ref,
                      wet_ref, bet_ref, w2b_ref, o_ref):
    # project_edge1 -> edge_transform, with ride-along t_b = he1 . w2b in col 200.
    he1 = _bdot(nfs_ref[...], w1a_ref[...]) + _bdot(ef_ref[...], w1b_ref[...]) + b1_ref[...]
    he1 = _apply_act(he1, "leaky_relu")
    t_b = jnp.sum(he1 * w2b_ref[...], axis=1, keepdims=True)
    etr = _bdot(he1, wet_ref[...]) + bet_ref[...]
    o_ref[...] = _put_cols(etr, [(RIDE_COL_A, t_b)])


def _gnn_node_kernel(nf_ref, w_ref, b_ref, wea_ref, web_ref, o_ref):
    # GNNLayer: project_node + per-node logit partials s_a (dst side) / s_b (src side).
    x = nf_ref[...]
    hv = _bdot(x, w_ref[...]) + b_ref[...]
    s_a = jnp.sum(x * wea_ref[...], axis=1, keepdims=True)
    s_b = jnp.sum(x * web_ref[...], axis=1, keepdims=True)
    o_ref[...] = _put_cols(hv, [(RIDE_COL_A, s_a), (RIDE_COL_B, s_b)])


def _readout_node_kernel(nf_ref, wp_ref, bp_ref, wlb_ref, o_ref):
    # GlobalPool: project_nodes + per-node logit partial u_b = node_feats . wlb.
    x = nf_ref[...]
    hv = _bdot(x, wp_ref[...]) + bp_ref[...]
    u_b = jnp.sum(x * wlb_ref[...], axis=1, keepdims=True)
    o_ref[...] = _put_cols(hv, [(RIDE_COL_A, u_b)])


def _gru_kernel(post_relu, x_ref, h_ref,
                wir_ref, wiz_ref, win_ref, whr_ref, whz_ref, whn_ref,
                br_ref, bz_ref, bin_ref, bhn_ref, o_ref):
    # Fused ELU(context) + nn.GRUCell; bf16 matmuls, f32 gates/nonlinearities.
    x = x_ref[...]
    x = jnp.where(x > 0, x, jnp.exp(jnp.minimum(x, 0.0)) - 1.0)   # ELU (clamped exp arg)
    h = h_ref[...]
    xb = x.astype(jnp.bfloat16)
    hb = h.astype(jnp.bfloat16)
    r = jax.nn.sigmoid(jnp.dot(xb, wir_ref[...], preferred_element_type=jnp.float32)
                       + jnp.dot(hb, whr_ref[...], preferred_element_type=jnp.float32)
                       + br_ref[...])
    z = jax.nn.sigmoid(jnp.dot(xb, wiz_ref[...], preferred_element_type=jnp.float32)
                       + jnp.dot(hb, whz_ref[...], preferred_element_type=jnp.float32)
                       + bz_ref[...])
    n = jnp.tanh(jnp.dot(xb, win_ref[...], preferred_element_type=jnp.float32) + bin_ref[...]
                 + r * (jnp.dot(hb, whn_ref[...], preferred_element_type=jnp.float32)
                        + bhn_ref[...]))
    out = (1.0 - z) * n + z * h
    if post_relu:
        out = jnp.maximum(out, 0.0)
    o_ref[...] = out


def _head_kernel(gl0_ref, gl1_ref, gp0_ref, gp1_ref,
                 wpl_ref, bpl_ref, wpp_ref, bpp_ref,
                 wmL_ref, wmP_ref, bm_ref,
                 w1L_ref, w1P_ref, b1_ref, gam_ref, bet_ref, mu_ref, var_ref,
                 w2_ref, b2_ref, w3_ref, b3_ref,
                 o0_ref, o1_ref, o2_ref, o3_ref, reg_ref):
    # Fused: predict heads (both towers) + MLP + F.normalize + MLP_2 (tiny M = batch).
    def predict(x_ref, w_ref, b_ref):
        return jnp.dot(x_ref[...], w_ref[...], preferred_element_type=jnp.float32) + b_ref[...]
    hl0 = predict(gl0_ref, wpl_ref, bpl_ref)
    hl1 = predict(gl1_ref, wpl_ref, bpl_ref)
    hp0 = predict(gp0_ref, wpp_ref, bpp_ref)
    hp1 = predict(gp1_ref, wpp_ref, bpp_ref)
    o0_ref[:, :64] = hl0
    o0_ref[:, 64:] = hp0
    o1_ref[:, :64] = hl1
    o1_ref[:, 64:] = hp1

    def mlp_normalize(hl, hp):
        y = jnp.dot(hl, wmL_ref[...], preferred_element_type=jnp.float32)
        y = y + jnp.dot(hp, wmP_ref[...], preferred_element_type=jnp.float32) + bm_ref[...]
        y = jnp.maximum(y, 0.0)
        nrm = jnp.sqrt(jnp.sum(y * y, axis=1, keepdims=True))
        return y / jnp.maximum(nrm, 1e-12)

    o2_ref[...] = mlp_normalize(hl0, hp0)
    o3_ref[...] = mlp_normalize(hl1, hp1)

    # MLP_2 on output_0.
    # TODO(synk): BatchNorm1d implemented in eval mode (running stats); train-mode differs.
    y = jnp.dot(hl0, w1L_ref[...], preferred_element_type=jnp.float32)
    y = y + jnp.dot(hp0, w1P_ref[...], preferred_element_type=jnp.float32) + b1_ref[...]
    y = (y - mu_ref[...]) * lax.rsqrt(var_ref[...] + 1e-5) * gam_ref[...] + bet_ref[...]
    y = jnp.maximum(y, 0.0)
    y = jnp.maximum(jnp.dot(y, w2_ref[...], preferred_element_type=jnp.float32) + b2_ref[...], 0.0)
    reg_ref[...] = jnp.sum(y * w3_ref[...], axis=1, keepdims=True) + b3_ref[...]


# ----------------------------- kernel wrappers -----------------------------

def pallas_proj_node(nf, ic):
    w, b = ic["project_node"]
    return _call_rowwise(_proj_node_kernel, [nf],
                         [w, b.reshape(1, -1), ic["w2a"].reshape(1, -1)],
                         (G_PAD,), nf.shape[0])


def pallas_edge_init(nf_src, ef, ic):
    w1a, w1b, b1 = ic["project_edge1"]
    wet, bet = ic["edge_transform"]
    return _call_rowwise(_edge_init_kernel, [nf_src, ef],
                         [w1a, w1b, b1.reshape(1, -1), wet, bet.reshape(1, -1),
                          ic["w2b"].reshape(1, -1)],
                         (G_PAD,), nf_src.shape[0])


def pallas_gnn_node(node_feats, lp):
    w, b = lp["project_node"]
    return _call_rowwise(_gnn_node_kernel, [node_feats],
                         [w, b.reshape(1, -1), lp["we_a"].reshape(1, -1),
                          lp["we_b"].reshape(1, -1)],
                         (G_PAD,), node_feats.shape[0])


def pallas_readout_node(node_feats, rp):
    w, b = rp["project_nodes"]
    return _call_rowwise(_readout_node_kernel, [node_feats],
                         [w, b.reshape(1, -1), rp["wlb"].reshape(1, -1)],
                         (G_PAD,), node_feats.shape[0])


def pallas_gru(ctx, h, p, post_relu):
    M = h.shape[0]
    consts = [p["wir"], p["wiz"], p["win"], p["whr"], p["whz"], p["whn"],
              p["b_r"].reshape(1, -1), p["b_z"].reshape(1, -1),
              p["bi_n"].reshape(1, -1), p["bh_n"].reshape(1, -1)]
    cost = pl.CostEstimate(flops=2 * M * G_PAD * G_PAD * 6,
                           transcendentals=4 * M * G_PAD,
                           bytes_accessed=3 * M * G_PAD * 4 + 6 * G_PAD * G_PAD * 2)
    return _call_rowwise(functools.partial(_gru_kernel, post_relu),
                         [ctx, h], consts, (G_PAD,), M, cost_estimate=cost)


def pallas_head(gl0, gl1, gp0, gp1, params):
    wpl, bpl = params["lig"]["predict"]
    wpp, bpp = params["prot"]["predict"]
    mlp, m2 = params["mlp"], params["mlp2"]
    consts = [wpl, bpl.reshape(1, -1), wpp, bpp.reshape(1, -1),
              mlp["wL"], mlp["wP"], mlp["b"].reshape(1, -1),
              m2["w1L"], m2["w1P"], m2["b1"].reshape(1, -1),
              m2["gamma"].reshape(1, -1), m2["beta"].reshape(1, -1),
              m2["mean"].reshape(1, -1), m2["var"].reshape(1, -1),
              m2["w2"], m2["b2"].reshape(1, -1),
              m2["w3row"].reshape(1, -1), m2["b3"].reshape(1, 1)]
    return _call_rowwise(_head_kernel, [gl0, gl1, gp0, gp1], consts,
                         (128, 128, 64, 64, 1), gl0.shape[0])


# ----------------------------- graph glue (plain JAX) -----------------------------

def segment_softmax(logits, segment_ids, num_segments):
    m = jax.ops.segment_max(logits, segment_ids, num_segments=num_segments)
    m = jnp.where(jnp.isfinite(m), m, 0.0)
    e = jnp.exp(logits - m[segment_ids])
    s = jax.ops.segment_sum(e, segment_ids, num_segments=num_segments)[segment_ids]
    return jnp.where(s > 0, e / jnp.maximum(s, 1e-30), 0.0)   # guard zero-in-degree nodes


def merge_graphs(g0, g1):
    """Concatenate two batched graphs so one forward serves both (shared params)."""
    n0, b0 = g0["num_nodes"], g0["num_graphs"]
    return dict(
        node_feats=jnp.concatenate([g0["node_feats"], g1["node_feats"]], axis=0),
        edge_feats=jnp.concatenate([g0["edge_feats"], g1["edge_feats"]], axis=0),
        src=jnp.concatenate([g0["src"], g1["src"] + n0]),
        dst=jnp.concatenate([g0["dst"], g1["dst"] + n0]),
        node2graph=jnp.concatenate([g0["node2graph"], g1["node2graph"] + b0]),
        num_graphs=b0 + g1["num_graphs"],
        num_nodes=n0 + g1["num_nodes"],
    )


def attentive_fp_forward(params, graph):
    """AttentiveFPPredictor(node=41, edge=E, layers=3, graph_feat=200->256 pad, timesteps=4)."""
    nf, ef = graph["node_feats"], graph["edge_feats"]
    src, dst, n2g = graph["src"], graph["dst"], graph["node2graph"]
    B, N = graph["num_graphs"], graph["num_nodes"]

    # ---- GetContext + AttentiveGRU1 ----
    ic = params["init_context"]
    hv_new = pallas_proj_node(nf, ic)                        # [N,256], col200 = hv_new . w2a
    t_a = hv_new[:, RIDE_COL_A:RIDE_COL_A + 1]
    e_tr = pallas_edge_init(nf[src], ef, ic)                 # [E,256], col200 = he1 . w2b
    t_b = e_tr[:, RIDE_COL_A:RIDE_COL_A + 1]
    logits = _leaky_relu(t_a[dst] + t_b + ic["b2"])          # project_edge2, off the MXU
    a = segment_softmax(logits, dst, N)                      # edge_softmax over dst
    context = jax.ops.segment_sum(a * e_tr, dst, num_segments=N)
    node_feats = pallas_gru(context, hv_new, ic["gru"], post_relu=True)   # ELU fused in kernel

    # ---- GNNLayer x (num_layers - 1) with AttentiveGRU2 ----
    for lp in params["gnn_layers"]:
        hv_proj = pallas_gnn_node(node_feats, lp)            # project_node + logit partials
        s_a = hv_proj[:, RIDE_COL_A:RIDE_COL_A + 1]
        s_b = hv_proj[:, RIDE_COL_B:RIDE_COL_B + 1]
        logits = _leaky_relu(s_a[dst] + s_b[src] + lp["be"])
        a = segment_softmax(logits, dst, N)
        # TODO(synk): hv_proj[src] gather + segment_sum stay in plain JAX; for large graphs
        # move in-kernel via a VMEM-resident node table + PrefetchScalarGridSpec.
        context = jax.ops.segment_sum(hv_proj[src] * a, dst, num_segments=N)
        node_feats = pallas_gru(context, node_feats, lp["gru"], post_relu=True)

    # ---- AttentiveFPReadout (num_timesteps GlobalPool steps) ----
    g_feats = jax.ops.segment_sum(node_feats, n2g, num_segments=B)
    for rp in params["readouts"]:
        hv_p = pallas_readout_node(node_feats, rp)           # project_nodes + u_b ride-along
        u_b = hv_p[:, RIDE_COL_A:RIDE_COL_A + 1]
        u_a = jnp.sum(jax.nn.relu(g_feats) * rp["wla"][None, :], axis=1, keepdims=True)  # [B,1]
        logits = _leaky_relu(u_a[n2g] + u_b + rp["bl"])
        a = segment_softmax(logits, n2g, B)                  # softmax_nodes
        context = jax.ops.segment_sum(hv_p * a, n2g, num_segments=B)
        g_feats = pallas_gru(context, g_feats, rp["gru"], post_relu=False)

    return g_feats   # [B, 256]; predict head fused into the final head kernel


def ecif_gnn_forward(params, bgl_0, bgp_0, bgl_1, bgp_1):
    B0 = bgl_0["num_graphs"]
    # One forward per tower over the merged (graphs_0 ++ graphs_1) batch.
    g_l = attentive_fp_forward(params["lig"], merge_graphs(bgl_0, bgl_1))    # [2B, 256]
    g_p = attentive_fp_forward(params["prot"], merge_graphs(bgp_0, bgp_1))   # [2B, 256]
    # Single fused head kernel: predict + cat + MLP + normalize + MLP_2.
    o0, o1, o2n, o3n, reg = pallas_head(g_l[:B0], g_l[B0:], g_p[:B0], g_p[B0:], params)
    return o2n, o3n, o0, o1, reg


# ----------------------------- deterministic params -----------------------------

def _uniform(key, shape, bound):
    return jax.random.uniform(key, shape, jnp.float32, -bound, bound)


def lin_init(key, fan_in, fan_out):
    k1, k2 = jax.random.split(key)
    bound = 1.0 / np.sqrt(fan_in)
    return _uniform(k1, (fan_in, fan_out), bound), _uniform(k2, (fan_out,), bound)


def _pad_w(w, rows=None, cols=None, dtype=None):
    r = rows if rows is not None else w.shape[0]
    c = cols if cols is not None else w.shape[1]
    w = jnp.pad(w, ((0, r - w.shape[0]), (0, c - w.shape[1])))
    return w.astype(dtype) if dtype is not None else w


def _pad_b(b, n=None):
    return b if n is None else jnp.pad(b, (0, n - b.shape[0]))


def gru_init(key, in_size, hidden):
    ks = jax.random.split(key, 4)
    bound = 1.0 / np.sqrt(hidden)
    w_ih = _uniform(ks[0], (in_size, 3 * hidden), bound)
    w_hh = _uniform(ks[1], (hidden, 3 * hidden), bound)
    b_ih = _uniform(ks[2], (3 * hidden,), bound)
    b_hh = _uniform(ks[3], (3 * hidden,), bound)
    H, GP = hidden, G_PAD

    def pw(w):  # pre-split, zero-padded, bf16 gate weights (lane-origin aligned dots)
        return _pad_w(w, rows=GP, cols=GP, dtype=jnp.bfloat16)

    return dict(
        wir=pw(w_ih[:, :H]), wiz=pw(w_ih[:, H:2 * H]), win=pw(w_ih[:, 2 * H:]),
        whr=pw(w_hh[:, :H]), whz=pw(w_hh[:, H:2 * H]), whn=pw(w_hh[:, 2 * H:]),
        b_r=_pad_b(b_ih[:H] + b_hh[:H], GP),
        b_z=_pad_b(b_ih[H:2 * H] + b_hh[H:2 * H], GP),
        bi_n=_pad_b(b_ih[2 * H:], GP), bh_n=_pad_b(b_hh[2 * H:], GP),
    )


def init_attentive_fp(key, node_feat, edge_feat, graph_feat=G_LOGICAL,
                      num_layers=3, num_timesteps=4, n_tasks=64):
    G, GP = graph_feat, G_PAD
    ks = iter(jax.random.split(key, 5 + 3 * (num_layers - 1) + 3 * num_timesteps + 1))

    w_pn, b_pn = lin_init(next(ks), node_feat, G)
    w_pe1, b_pe1 = lin_init(next(ks), node_feat + edge_feat, G)
    w_pe2, b_pe2 = lin_init(next(ks), 2 * G, 1)
    w_et, b_et = lin_init(next(ks), G, G)
    init_context = dict(
        project_node=(_pad_w(w_pn, cols=GP, dtype=jnp.bfloat16), _pad_b(b_pn, GP)),
        project_edge1=(_pad_w(w_pe1[:node_feat], cols=GP, dtype=jnp.bfloat16),
                       _pad_w(w_pe1[node_feat:], cols=GP, dtype=jnp.bfloat16),
                       _pad_b(b_pe1, GP)),
        w2a=_pad_b(w_pe2[:G, 0], GP), w2b=_pad_b(w_pe2[G:, 0], GP), b2=b_pe2,
        edge_transform=(_pad_w(w_et, rows=GP, cols=GP, dtype=jnp.bfloat16), _pad_b(b_et, GP)),
        gru=gru_init(next(ks), G, G),
    )

    gnn_layers = []
    for _ in range(num_layers - 1):
        w_pe, b_pe = lin_init(next(ks), 2 * G, 1)
        w_n, b_n = lin_init(next(ks), G, G)
        gnn_layers.append(dict(
            we_a=_pad_b(w_pe[:G, 0], GP), we_b=_pad_b(w_pe[G:, 0], GP), be=b_pe,
            project_node=(_pad_w(w_n, rows=GP, cols=GP, dtype=jnp.bfloat16), _pad_b(b_n, GP)),
            gru=gru_init(next(ks), G, G)))

    readouts = []
    for _ in range(num_timesteps):
        w_l, b_l = lin_init(next(ks), 2 * G, 1)
        w_p, b_p = lin_init(next(ks), G, G)
        readouts.append(dict(
            wla=_pad_b(w_l[:G, 0], GP), wlb=_pad_b(w_l[G:, 0], GP), bl=b_l,
            project_nodes=(_pad_w(w_p, rows=GP, cols=GP, dtype=jnp.bfloat16), _pad_b(b_p, GP)),
            gru=gru_init(next(ks), G, G)))

    w_pred, b_pred = lin_init(next(ks), G, n_tasks)
    return dict(init_context=init_context, gnn_layers=gnn_layers, readouts=readouts,
                predict=(_pad_w(w_pred, rows=GP), b_pred))   # f32; used in the tiny head kernel


def init_ecif_gnn(key):
    ks = jax.random.split(key, 6)
    w_mlp, b_mlp = lin_init(ks[2], 128, 64)
    w1, b1 = lin_init(ks[3], 128, 64)
    w2, b2 = lin_init(ks[4], 64, 32)
    w3, b3 = lin_init(ks[5], 32, 1)
    return dict(
        lig=init_attentive_fp(ks[0], node_feat=41, edge_feat=10),
        prot=init_attentive_fp(ks[1], node_feat=41, edge_feat=5),
        mlp=dict(wL=w_mlp[:64], wP=w_mlp[64:], b=b_mlp),     # split: no [B,128] concat matmul
        mlp2=dict(w1L=w1[:64], w1P=w1[64:], b1=b1,
                  gamma=jnp.ones((64,), jnp.float32), beta=jnp.zeros((64,), jnp.float32),
                  mean=jnp.zeros((64,), jnp.float32), var=jnp.ones((64,), jnp.float32),
                  w2=w2, b2=b2, w3row=w3[:, 0], b3=b3),
    )


def make_batched_graph(key, num_graphs, nodes_per_graph, node_feat_size, edge_feat_size):
    """Batched bidirectional-ring graphs (every node has in-edges, like a DGL batch)."""
    src, dst, n2g = [], [], []
    for g in range(num_graphs):
        off = g * nodes_per_graph
        for i in range(nodes_per_graph):
            j = (i + 1) % nodes_per_graph
            src += [off + i, off + j]
            dst += [off + j, off + i]
        n2g += [g] * nodes_per_graph
    N, E = num_graphs * nodes_per_graph, len(src)
    k1, k2 = jax.random.split(key)
    return dict(node_feats=jax.random.normal(k1, (N, node_feat_size), jnp.float32),
                edge_feats=jax.random.normal(k2, (E, edge_feat_size), jnp.float32),
                src=jnp.array(src, jnp.int32), dst=jnp.array(dst, jnp.int32),
                node2graph=jnp.array(n2g, jnp.int32),
                num_graphs=num_graphs, num_nodes=N)


if __name__ == "__main__":
    key = jax.random.PRNGKey(0)
    kp, kg = jax.random.split(key)
    params = init_ecif_gnn(kp)

    gk = jax.random.split(kg, 4)
    B, NODES = 2, 6
    bgl_0 = make_batched_graph(gk[0], B, NODES, 41, 10)   # ligand graph: 'atom'/'bond'
    bgp_0 = make_batched_graph(gk[1], B, NODES, 41, 5)    # protein graph: 'feats'/'feats'
    bgl_1 = make_batched_graph(gk[2], B, NODES, 41, 10)
    bgp_1 = make_batched_graph(gk[3], B, NODES, 41, 5)

    out = ecif_gnn_forward(params, bgl_0, bgp_0, bgl_1, bgp_1)
    out = jax.block_until_ready(out)

    o2, o3, o0, o1, reg = out
    assert o2.shape == (B, 64) and o3.shape == (B, 64)
    assert o0.shape == (B, 128) and o1.shape == (B, 128)
    assert reg.shape == (B, 1)
    assert all(bool(jnp.all(jnp.isfinite(x))) for x in out)
    print("KERNEL_OK")
</pallas_src>

<mosaic_0001>
module attributes {stable_mosaic.version = 11 : i64} {
  func.func @_proj_node_kernel(%arg0: i32, %arg1: memref<16x41xf32, #tpu.memory_space<vmem>>, %arg2: memref<41x256xbf16, #tpu.memory_space<vmem>>, %arg3: memref<1x256xf32, #tpu.memory_space<vmem>>, %arg4: memref<1x256xf32, #tpu.memory_space<vmem>>, %arg5: memref<16x256xf32, #tpu.memory_space<vmem>>) attributes {dimension_semantics = [#tpu.dimension_semantics<parallel>], iteration_bounds = array<i64: 2>, scalar_prefetch = 0 : i64, scratch_operands = 0 : i64, tpu.core_type = #tpu.core_type<tc>, window_params = [{transform_indices = @transform_0, window_bounds = array<i64: 16, 41>}, {pipeline_mode = #tpu.pipeline_mode<synchronous>, transform_indices = @transform_1, window_bounds = array<i64: 41, 256>}, {pipeline_mode = #tpu.pipeline_mode<synchronous>, transform_indices = @transform_2, window_bounds = array<i64: 1, 256>}, {pipeline_mode = #tpu.pipeline_mode<synchronous>, transform_indices = @transform_3, window_bounds = array<i64: 1, 256>}, {transform_indices = @transform_4, window_bounds = array<i64: 16, 256>}]} {
    %c0 = arith.constant 0 : index
    %c0_0 = arith.constant 0 : index
    %0 = vector.load %arg1[%c0, %c0_0] : memref<16x41xf32, #tpu.memory_space<vmem>>, vector<16x41xf32>
    %c0_1 = arith.constant 0 : index
    %c0_2 = arith.constant 0 : index
    %1 = vector.load %arg2[%c0_1, %c0_2] : memref<41x256xbf16, #tpu.memory_space<vmem>>, vector<41x256xbf16>
    %2 = arith.truncf %0 : vector<16x41xf32> to vector<16x41xbf16>
    %cst = arith.constant dense<0.000000e+00> : vector<16x256xf32>
    %3 = tpu.matmul %2, %1, %cst {dimension_numbers = #tpu.dot_dimension_numbers<[1], [0], [0], [1], [0, 0, 1, 1], [], []>} : vector<16x41xbf16>, vector<41x256xbf16>, vector<16x256xf32> -> vector<16x256xf32>
    %c0_3 = arith.constant 0 : index
    %c0_4 = arith.constant 0 : index
    %4 = vector.load %arg3[%c0_3, %c0_4] : memref<1x256xf32, #tpu.memory_space<vmem>>, vector<1x256xf32>
    %5 = vector.broadcast %4 : vector<1x256xf32> to vector<16x256xf32>
    %6 = arith.addf %3, %5 : vector<16x256xf32>
    %cst_5 = arith.constant 0.000000e+00 : f32
    %7 = vector.broadcast %cst_5 : f32 to vector<16x256xf32>
    %8 = arith.cmpf ogt, %6, %7 : vector<16x256xf32>
    %cst_6 = arith.constant 0.00999999977 : f32
    %9 = vector.broadcast %cst_6 : f32 to vector<16x256xf32>
    %10 = arith.mulf %9, %6 : vector<16x256xf32>
    %11 = arith.select %8, %6, %10 : vector<16x256xi1>, vector<16x256xf32>
    %c0_7 = arith.constant 0 : index
    %c0_8 = arith.constant 0 : index
    %12 = vector.load %arg4[%c0_7, %c0_8] : memref<1x256xf32, #tpu.memory_space<vmem>>, vector<1x256xf32>
    %13 = vector.broadcast %12 : vector<1x256xf32> to vector<16x256xf32>
    %14 = arith.mulf %11, %13 : vector<16x256xf32>
    %cst_9 = arith.constant dense<0.000000e+00> : vector<16xf32>
    %15 = vector.multi_reduction <add>, %14, %cst_9 [1] : vector<16x256xf32> to vector<16xf32>
    %16 = vector.shape_cast %15 : vector<16xf32> to vector<16x1xf32>
    %17 = tpu.iota {dimensions = array<i32: 1>} : vector<16x256xi32>
    %c200_i32 = arith.constant 200 : i32
    %18 = vector.broadcast %c200_i32 : i32 to vector<16x256xi32>
    %19 = arith.cmpi eq, %17, %18 : vector<16x256xi32>
    %20 = vector.shape_cast %16 : vector<16x1xf32> to vector<16x1xf32>
    %21 = vector.broadcast %20 : vector<16x1xf32> to vector<16x256xf32>
    %22 = arith.select %19, %21, %11 : vector<16x256xi1>, vector<16x256xf32>
    %c0_10 = arith.constant 0 : index
    %c0_11 = arith.constant 0 : index
    %23 = vector.load %arg5[%c0_10, %c0_11] : memref<16x256xf32, #tpu.memory_space<vmem>>, vector<16x256xf32>
    tpu.vector_store %arg5[%c0_10, %c0_11], %22 {strides = array<i32>} : memref<16x256xf32, #tpu.memory_space<vmem>>, vector<16x256xf32>,
    return
  }
  func.func @transform_0(%arg0: i32) -> (i32, i32) {
    %c0_i32 = arith.constant 0 : i32
    %c0_i32_0 = arith.constant 0 : i32
    return %arg0, %c0_i32 : i32, i32
  }
  func.func @transform_1(%arg0: i32) -> (i32, i32) {
    %c0_i32 = arith.constant 0 : i32
    %c0_i32_0 = arith.constant 0 : i32
    %c0_i32_1 = arith.constant 0 : i32
    return %c0_i32, %c0_i32_0 : i32, i32
  }
  func.func @transform_2(%arg0: i32) -> (i32, i32) {
    %c0_i32 = arith.constant 0 : i32
    %c0_i32_0 = arith.constant 0 : i32
    %c0_i32_1 = arith.constant 0 : i32
    return %c0_i32, %c0_i32_0 : i32, i32
  }
  func.func @transform_3(%arg0: i32) -> (i32, i32) {
    %c0_i32 = arith.constant 0 : i32
    %c0_i32_0 = arith.constant 0 : i32
    %c0_i32_1 = arith.constant 0 : i32
    return %c0_i32, %c0_i32_0 : i32, i32
  }
  func.func @transform_4(%arg0: i32) -> (i32, i32) {
    %c0_i32 = arith.constant 0 : i32
    %c0_i32_0 = arith.constant 0 : i32
    return %arg0, %c0_i32 : i32, i32
  }
}

</mosaic_0001>

<llo_original>
// kernel: tpu_custom_call.1
$region0: #{tpu_custom_call.1}
  #allocation0 [shape = 'u32[]', space=smem, size = 0x4, offset = 0x4, fixed_abs, tag = 'smem constant byte address 0x4 - core index']
  #allocation1 [shape = 'u32[144,128]{1,0:T(1,128)}', space=vmem, size = 0x12000, scoped, tag = 'internal scratch']
  %s0 = inlined_call_operand.hbm [shape: f32[32,41], index: 0, kind: input, shape index: {}]
  %s1 = inlined_call_operand.hbm [shape: bf16[41,256], index: 1, kind: input, shape index: {}]
  %s2 = inlined_call_operand.vmem [shape: f32[1,256], index: 2, kind: input, shape index: {}]
  %s3 = inlined_call_operand.vmem [shape: f32[1,256], index: 3, kind: input, shape index: {}]
  %s4 = inlined_call_operand.hbm [shape: f32[32,256], index: 4, kind: output, shape index: {}]
  %s5 = sld [smem:[#allocation0]]
  $region57: #{tpu_custom_call.1} parent=0
    _
  %s7 = ssub.s32 1, %s5
  %s8 = scalar_select 0, %s7, %s5
  $region1: #{tpu_custom_call.1} parent=0
    #allocation2 [shape = 'u8[16384]{0}', space=vmem, size = 0x4000, scoped, tag = 'input window, operand 0']
    #allocation3 [shape = 's32[2]{0}', space=sflag, size = 0x8, scoped, tag = 'scoped memory for tpu_custom_call.1']
    #allocation4 [shape = 's32[2]{0}', space=sflag, size = 0x8, scoped, tag = 'scoped memory for tpu_custom_call.1']
    #allocation5 [shape = 'u8[24576]{0}', space=vmem, size = 0x6000, scoped, tag = 'input window, operand 1, single buffered']
    #allocation6 [shape = 's32[1]{0}', space=sflag, size = 0x4, scoped, tag = 'scoped memory for tpu_custom_call.1']
    #allocation7 [shape = 'u8[32768]{0}', space=vmem, size = 0x8000, scoped, tag = 'output window, operand 0']
    %9 = vsyncpa [#allocation3], 0
    %s10 = scalar_lea.sflag [#allocation3], 1
    %11 = vsyncpa %s10, 0
    %12 = vsyncpa [#allocation6], 0
    %13 = vsyncpa [#allocation4], 0
    %s14 = scalar_lea.sflag [#allocation4], 1
    %15 = vsyncpa %s14, 0
    loop: start=0, step=1, limit=4
    $region2: #{tpu_custom_call.1} parent=1 // loop_pre_header
      _
    $region3: #{tpu_custom_call.1} parent=1 // loop_header
      %s17 = sphi 0, %s21
      %p18 = scmp.ge.s32.totalorder %s17, 4
      %s27 = sphi 0, %s29
      %s30 = sphi 0, %s27
      %s31 = sphi 0, %s30
      %s47 = sphi 0, %s31
      %s51 = sphi 0, %s51
      %s53 = sphi 0, %s51
      %s54 = sphi 0, %s53
      %s68 = sphi 0, %s54
      %s72 = sphi 0, %s72
      %s74 = sphi 0, %s72
      %s75 = sphi 0, %s74
      %s89 = sphi 0, %s75
      %s93 = sphi 0, %s93
      %s95 = sphi 0, %s93
      %s96 = sphi 0, %s95
      %s110 = sphi 0, %s96
      %s116 = sphi 0, %s118
      %s119 = sphi 0, %s116
      %s120 = sphi 0, %s119
      %s136 = sphi 0, %s120
    $region4: #{tpu_custom_call.1} parent=1 // loop_header_branch
      %20 = sbr.rel (%p18) target = $region8
    $region5: #{tpu_custom_call.1} parent=1 // loop_body
      %s22 = ssub.s32 %s17, 1
      %s23 = ssub.s32 %s17, 2
      %s24 = sadd.s32 %s17, 1
      %s25 = ssub.s32 %s17, %s24
      %p26 = scmp.eq.s32.totalorder %s25, 0
      %s28 = sadd.s32 %s27, 1
      %s29 = scalar_select %p26, %s27, %s28
      %p32 = pneg %p26
      %p33 = scmp.eq.s32.totalorder %s17, 1
      %p34 = por %p32, %p33
      %p35 = scmp.ne.s32.totalorder %s27, %s30
      %p36 = scmp.eq.s32.totalorder %s17, 0
      %p37 = por %p35, %p36
      %p38 = scmp.ne.s32.totalorder %s27, %s30
      %p39 = scmp.eq.s32.totalorder %s22, 1
      %p40 = por %p38, %p39
      %p41 = scmp.ne.s32.totalorder %s30, %s31
      %p42 = scmp.eq.s32.totalorder %s22, 0
      %p43 = por %p41, %p42
      %p44 = scmp.ne.s32.totalorder %s30, %s31
      %p45 = scmp.eq.s32.totalorder %s23, 1
      %p46 = por %p44, %p45
      %p48 = scmp.ne.s32.totalorder %s31, %s47
      %p49 = scmp.eq.s32.totalorder %s23, 0
      %p50 = por %p48, %p49
      %s52 = sadd.s32 %s51, 1
      %p55 = scmp.eq.s32.totalorder %s17, 1
      %p56 = scmp.ne.s32.totalorder %s51, %s53
      %p57 = scmp.eq.s32.totalorder %s17, 0
      %p58 = por %p56, %p57
      %p59 = scmp.ne.s32.totalorder %s51, %s53
      %p60 = scmp.eq.s32.totalorder %s22, 1
      %p61 = por %p59, %p60
      %p62 = scmp.ne.s32.totalorder %s53, %s54
      %p63 = scmp.eq.s32.totalorder %s22, 0
      %p64 = por %p62, %p63
      %p65 = scmp.ne.s32.totalorder %s53, %s54
      %p66 = scmp.eq.s32.totalorder %s23, 1
      %p67 = por %p65, %p66
      %p69 = scmp.ne.s32.totalorder %s54, %s68
      %p70 = scmp.eq.s32.totalorder %s23, 0
      %p71 = por %p69, %p70
      %s73 = sadd.s32 %s72, 1
      %p76 = scmp.eq.s32.totalorder %s17, 1
      %p77 = scmp.ne.s32.totalorder %s72, %s74
      %p78 = scmp.eq.s32.totalorder %s17, 0
      %p79 = por %p77, %p78
      %p80 = scmp.ne.s32.totalorder %s72, %s74
      %p81 = scmp.eq.s32.totalorder %s22, 1
      %p82 = por %p80, %p81
      %p83 = scmp.ne.s32.totalorder %s74, %s75
      %p84 = scmp.eq.s32.totalorder %s22, 0
      %p85 = por %p83, %p84
      %p86 = scmp.ne.s32.totalorder %s74, %s75
      %p87 = scmp.eq.s32.totalorder %s23, 1
      %p88 = por %p86, %p87
      %p90 = scmp.ne.s32.totalorder %s75, %s89
      %p91 = scmp.eq.s32.totalorder %s23, 0
      %p92 = por %p90, %p91
      %s94 = sadd.s32 %s93, 1
      %p97 = scmp.eq.s32.totalorder %s17, 1
      %p98 = scmp.ne.s32.totalorder %s93, %s95
      %p99 = scmp.eq.s32.totalorder %s17, 0
      %p100 = por %p98, %p99
      %p101 = scmp.ne.s32.totalorder %s93, %s95
      %p102 = scmp.eq.s32.totalorder %s22, 1
      %p103 = por %p101, %p102
      %p104 = scmp.ne.s32.totalorder %s95, %s96
      %p105 = scmp.eq.s32.totalorder %s22, 0
      %p106 = por %p104, %p105
      %p107 = scmp.ne.s32.totalorder %s95, %s96
      %p108 = scmp.eq.s32.totalorder %s23, 1
      %p109 = por %p107, %p108
      %p111 = scmp.ne.s32.totalorder %s96, %s110
      %p112 = scmp.eq.s32.totalorder %s23, 0
      %p113 = por %p111, %p112
      %s114 = ssub.s32 %s17, %s24
      %p115 = scmp.eq.s32.totalorder %s114, 0
      %s117 = sadd.s32 %s116, 1
      %s118 = scalar_select %p115, %s116, %s117
      %p121 = pneg %p115
      %p122 = scmp.eq.s32.totalorder %s17, 1
      %p123 = por %p121, %p122
      %p124 = scmp.ne.s32.totalorder %s116, %s119
      %p125 = scmp.eq.s32.totalorder %s17, 0
      %p126 = por %p124, %p125
      %p127 = scmp.ne.s32.totalorder %s116, %s119
      %p128 = scmp.eq.s32.totalorder %s22, 1
      %p129 = por %p127, %p128
      %p130 = scmp.ne.s32.totalorder %s119, %s120
      %p131 = scmp.eq.s32.totalorder %s22, 0
      %p132 = por %p130, %p131
      %p133 = scmp.ne.s32.totalorder %s119, %s120
      %p134 = scmp.eq.s32.totalorder %s23, 1
      %p135 = por %p133, %p134
      %p137 = scmp.ne.s32.totalorder %s120, %s136
      %p138 = scmp.eq.s32.totalorder %s23, 0
      %p139 = por %p137, %p138
      %p140 = scmp.le.s32.totalorder 1, %s17
      %p141 = scmp.lt.s32.totalorder %s17, 3
      %p142 = pnand %p140, %p141
      %p143 = pneg %p142
      // Predicated region
      $region9: #{tpu_custom_call.1} parent=5 // pred_check
        _
      $region10: #{tpu_custom_call.1} parent=5 // pred_check_branch
        %145 = sbr.rel (%p142) target = $region12
      $region11: #{tpu_custom_call.1} parent=5 // pred_region
        %s146 = ssub.s32 %s17, 1
        // Predicated region
        $region13: #{tpu_custom_call.1} parent=11 // pred_check
          %p147 = pneg %p64
        $region14: #{tpu_custom_call.1} parent=11 // pred_check_branch
          %149 = sbr.rel (%p147) target = $region16
        $region15: #{tpu_custom_call.1} parent=11 // pred_region
          %s151 = ssub.s32 768, 768
          %152 = vsyncadd [#allocation6], %s151
          %s153 = sshll.u32 [#allocation5], 4
          %s154 = int_to_ptr.vmem [resolvable:$true] %s153
          %159 = dma.hbm_to_vmem [thread:$0]  %s1, 768, %s154, [#allocation6], 128, 128, 8
        $region16: #{tpu_custom_call.1} parent=11 // pred_fallthru
          _
        // Predicated region
        $region17: #{tpu_custom_call.1} parent=11 // pred_check
          %p160 = pneg %p85
        $region18: #{tpu_custom_call.1} parent=11 // pred_check_branch
          %162 = sbr.rel (%p160) target = $region20
        $region19: #{tpu_custom_call.1} parent=11 // pred_region
          _
        $region20: #{tpu_custom_call.1} parent=11 // pred_fallthru
          _
        // Predicated region
        $region21: #{tpu_custom_call.1} parent=11 // pred_check
          %p163 = pneg %p106
        $region22: #{tpu_custom_call.1} parent=11 // pred_check_branch
          %165 = sbr.rel (%p163) target = $region24
        $region23: #{tpu_custom_call.1} parent=11 // pred_region
          _
        $region24: #{tpu_custom_call.1} parent=11 // pred_fallthru
          _
      $region12: #{tpu_custom_call.1} parent=5 // pred_fallthru
        _
      %p166 = scmp.lt.s32.totalorder %s17, 2
      // Predicated region
      $region25: #{tpu_custom_call.1} parent=5 // pred_check
        %p167 = pneg %p166
      $region26: #{tpu_custom_call.1} parent=5 // pred_check_branch
        %169 = sbr.rel (%p167) target = $region28
      $region27: #{tpu_custom_call.1} parent=5 // pred_region
        // Predicated region
        $region29: #{tpu_custom_call.1} parent=27 // pred_check
          %p170 = pneg %p37
        $region30: #{tpu_custom_call.1} parent=27 // pred_check_branch
          %172 = sbr.rel (%p170) target = $region32
        $region31: #{tpu_custom_call.1} parent=27 // pred_region
          %s173 = sand.u32 %s27, 1
          %s174 = scalar_lea.sflag [#allocation3], %s173
          %s175 = sand.u32 %s27, 1
          %s176 = smul.addr %s175, 16
          %s177 = scalar_lea.vmem [#allocation2], %s176
          %s178 = smul.u32 2, %s17
          %s180 = ssub.s32 256, 256
          %181 = vsyncadd %s174, %s180
          %s182 = smul.addr %s178, 128
          %s183 = scalar_lea.hbm %s0, %s182
          %s184 = sshll.u32 %s177, 4
          %s185 = int_to_ptr.vmem [resolvable:$true] %s184
          %190 = dma.hbm_to_vmem [thread:$0]  %s183, 256, %s185, %s174, 128, 128, 8
        $region32: #{tpu_custom_call.1} parent=27 // pred_fallthru
          _
      $region28: #{tpu_custom_call.1} parent=5 // pred_fallthru
        _
      %p191 = scmp.le.s32.totalorder 1, %s17
      %p192 = scmp.lt.s32.totalorder %s17, 3
      %p193 = pnand %p191, %p192
      %p194 = pneg %p193
      // Predicated region
      $region33: #{tpu_custom_call.1} parent=5 // pred_check
        _
      $region34: #{tpu_custom_call.1} parent=5 // pred_check_branch
        %196 = sbr.rel (%p193) target = $region36
      $region35: #{tpu_custom_call.1} parent=5 // pred_region
        %s197 = ssub.s32 %s17, 1
        %s198 = sand.u32 %s30, 1
        %s199 = scalar_lea.sflag [#allocation3], %s198
        %s200 = sand.u32 %s30, 1
        %s201 = smul.addr %s200, 16
        %s202 = scalar_lea.vmem [#allocation2], %s201
        // Predicated region
        $region37: #{tpu_custom_call.1} parent=35 // pred_check
          %p203 = pneg %p43
        $region38: #{tpu_custom_call.1} parent=35 // pred_check_branch
          %205 = sbr.rel (%p203) target = $region40
        $region39: #{tpu_custom_call.1} parent=35 // pred_region
          %206 = dma.done %s199, 256
        $region40: #{tpu_custom_call.1} parent=35 // pred_fallthru
          _
        // Predicated region
        $region41: #{tpu_custom_call.1} parent=35 // pred_check
          %p207 = pneg %p64
        $region42: #{tpu_custom_call.1} parent=35 // pred_check_branch
          %209 = sbr.rel (%p207) target = $region44
        $region43: #{tpu_custom_call.1} parent=35 // pred_region
          %210 = dma.done [#allocation6], 768
        $region44: #{tpu_custom_call.1} parent=35 // pred_fallthru
          _
        %s211 = sand.u32 %s30, 1
        %s212 = scalar_lea.sflag [#allocation3], %s211
        %s213 = sand.u32 %s30, 1
        %s214 = smul.addr %s213, 16
        %s215 = scalar_lea.vmem [#allocation2], %s214
        %p216 = pneg %p43
        %p217 = pneg %p40
        %p218 = pneg %p64
        %p219 = pneg %p61
        %p220 = pneg %p85
        %p221 = pneg %p82
        %p222 = pneg %p106
        %p223 = pneg %p103
        %p224 = pneg %p132
        %p225 = pneg %p129
        %s226 = sand.u32 %s119, 1
        %s227 = scalar_lea.sflag [#allocation4], %s226
        %s228 = sand.u32 %s119, 1
        %s229 = smul.addr %s228, 32
        %s230 = scalar_lea.vmem [#allocation7], %s229
        %s231 = smul.u32 2, %s22
        %s232 = smul.u32 2, %s22
        %v234 = vld [vmem:[%s202] sm:$0xff]
        %v235 = vld [vmem:[%s202 + $0x8] sm:$0xff]
        %v236 = vld [vmem:[#allocation5] sm:$0xff]
        %v237 = vld [vmem:[#allocation5 + $0x8] sm:$0xff]
        %v238 = vld [vmem:[#allocation5 + $0x10] sm:$0xff]
        %v239 = vld [vmem:[#allocation5 + $0x18] sm:$0xff]
        %v240 = vld [vmem:[#allocation5 + $0x20] sm:$0xff]
        %v241 = vld [vmem:[#allocation5 + $0x28] sm:$0x11]
        %v242 = vpack.c.bf16 %v235, %v234
        %v243 = vld [vmem:[%s2] sm:$0x3]
        %v245 = vlaneseq
        %v246 = vshrl.u32 %v245, 7
        %v247 = vsub.s32 0, %v246
        %v248 = vrot.slane %v243, %v247
        %v249 = vlaneseq
        %v250 = vshrl.u32 %v249, 7
        %v251 = vsub.s32 1, %v250
        %v252 = vrot.slane %v243, %v251
        %v261 = vunpack.c.l.b16 %v236
        %v262 = vunpack.c.h.b16 %v236
        %v263 = vunpack.c.l.b16 %v237
        %v264 = vunpack.c.h.b16 %v237
        %v265 = vunpack.c.l.b16 %v238
        %v266 = vunpack.c.h.b16 %v238
        %v267 = vunpack.c.l.b16 %v239
        %v268 = vunpack.c.h.b16 %v239
        %v269 = vunpack.c.l.b16 %v240
        %v270 = vunpack.c.h.b16 %v240
        %v271 = vunpack.c.l.b16 %v241
        %v272 = vunpack.c.h.b16 %v241
        %v273 = vpack.c.b16 %v263, %v261
        %v274 = vpack.c.b16 %v264, %v262
        %v275 = vpack.c.b16 %v267, %v265
        %v276 = vpack.c.b16 %v268, %v266
        %v277 = vpack.c.b16 %v271, %v269
        %v278 = vpack.c.b16 %v272, %v270
        %vm283 = vcmask 334848
        %v285 = vsel %vm283, %v242, 0
        %vm287 = vcmask 1043456
        %vm288 = vcmask 1044480
        %v289 = vsel %vm287, 4294967295, 65535
        %v290 = vsel %vm288, %v289, 0
        %v292 = vand.u32 %v277, %v290
        %v295 = vand.u32 %v278, %v290
        %297 = vmatprep.subr.bf16.mxu0 %v274
        %298 = vmatpush1.bf16.msra.mxu0 %v273
        %299 = vmatprep.subr.bf16.mxu0 %v276
        %300 = vmatpush1.bf16.msra.mxu0 %v275
        %301 = vmatprep.subr.bf16.mxu0 %v295
        %302 = vmatpush1.bf16.msra.mxu0 %v292
        %303 = vmatprep.subr.bf16.mxu0 0
        %304 = vmatpush1.bf16.msra.mxu0 0
        %305 = vmatprep.subr.bf16.mxu0 0
        %306 = vmatpush1.bf16.msra.mxu0 0
        %307 = vmatprep.subr.bf16.mxu0 0
        %308 = vmatpush1.bf16.msra.mxu0 0
        %309 = vmatprep.subr.bf16.mxu0 0
        %310 = vmatpush1.bf16.msra.mxu0 0
        %311 = vmatprep.subr.bf16.mxu0 0
        %312 = vmatpush1.bf16.msra.mxu0 0
        %313 = vmatprep.subr.bf16.mxu0 0
        %314 = vmatpush1.bf16.msra.mxu0 0
        %315 = vmatprep.subr.bf16.mxu0 0
        %316 = vmatpush1.bf16.msra.mxu0 0
        %317 = vmatprep.subr.bf16.mxu0 0
        %318 = vmatpush1.bf16.msra.mxu0 0
        %319 = vmatprep.subr.bf16.mxu0 0
        %320 = vmatpush1.bf16.msra.mxu0 0
        %321 = vmatprep.subr.bf16.mxu0 0
        %322 = vmatpush1.bf16.msra.mxu0 0
        %323 = vmatprep.subr.bf16.mxu0 0
        %324 = vmatpush1.bf16.msra.mxu0 0
        %325 = vmatprep.subr.bf16.mxu0 0
        %326 = vmatpush1.bf16.msra.mxu0 0
        %327 = vmatprep.subr.bf16.mxu0 0
        %328 = vmatpush1.bf16.msra.mxu0 0
        %329 = vmatprep.mubr.bf16.mxu0 0
        %330 = vmatmul.mubr.bf16.gmra.mrb[0].mxu0 %v285
        %v331 = vpop.f32.mrb[0].mxu0
        %v332 = vadd.f32 %v248, %v331
        %v333 = vpop.f32.mrb[0].mxu0
        %v334 = vadd.f32 %v252, %v333
        %v335 = vpop.f32.mrb[0].mxu0
        %v336 = vadd.f32 %v248, %v335
        %v337 = vpop.f32.mrb[0].mxu0
        %v338 = vadd.f32 %v252, %v337
        %339 = vdwg.mxu0
        %vm340 = vcmp.gt.f32.partialorder %v332, 0.0
        %vm341 = vcmp.gt.f32.partialorder %v334, 0.0
        %vm342 = vcmp.gt.f32.partialorder %v336, 0.0
        %vm343 = vcmp.gt.f32.partialorder %v338, 0.0
        %v344 = vmul.f32 %v332, 0.01
        %v345 = vmul.f32 %v334, 0.01
        %v346 = vmul.f32 %v336, 0.01
        %v347 = vmul.f32 %v338, 0.01
        %v348 = vsel %vm340, %v332, %v344
        %v349 = vsel %vm341, %v334, %v345
        %v350 = vsel %vm342, %v336, %v346
        %v351 = vsel %vm343, %v338, %v347
        %v352 = vld [vmem:[%s3] sm:$0x3]
        %v354 = vlaneseq
        %v355 = vshrl.u32 %v354, 7
        %v356 = vsub.s32 0, %v355
        %v357 = vrot.slane %v352, %v356
        %v358 = vlaneseq
        %v359 = vshrl.u32 %v358, 7
        %v360 = vsub.s32 1, %v359
        %v361 = vrot.slane %v352, %v360
        %v364 = vmul.f32 %v348, %v357
        %v365 = vmul.f32 %v349, %v361
        %v366 = vmul.f32 %v350, %v357
        %v367 = vmul.f32 %v351, %v361
        %v368 = vadd.f32 %v364, %v365
        %369 = vadd.xlane.f32.xlu0 %v368
        %v370 = vpop.xlane.xlu0 %369
        %v371 = vadd.f32 %v366, %v367
        %372 = vadd.xlane.f32.xlu0 %v371
        %v373 = vpop.xlane.xlu0 %372
        %v374 = vlaneseq
        %v375 = vand.u32 %v374, 127
        %v376 = vadd.s32 %v375, 128
        %vm377 = vcmp.eq.s32.totalorder %v375, 200
        %vm378 = vcmp.eq.s32.totalorder %v376, 200
        %v379 = vsel %vm377, %v370, %v348
        %v380 = vsel %vm378, %v370, %v349
        %v381 = vsel %vm377, %v373, %v350
        %v382 = vsel %vm378, %v373, %v351
        %383 = vst [vmem:[%s230] sm:$0xff] %v379
        %384 = vst [vmem:[%s230 + $0x8] sm:$0xff] %v380
        %385 = vst [vmem:[%s230 + $0x10] sm:$0xff] %v381
        %386 = vst [vmem:[%s230 + $0x18] sm:$0xff] %v382
        %s387 = sand.u32 %s119, 1
        %s388 = scalar_lea.sflag [#allocation4], %s387
        %s389 = sand.u32 %s119, 1
        %s390 = smul.addr %s389, 32
        %s391 = scalar_lea.vmem [#allocation7], %s390
        // Predicated region
        $region45: #{tpu_custom_call.1} parent=35 // pred_check
          %p392 = pneg %p129
        $region46: #{tpu_custom_call.1} parent=35 // pred_check_branch
          %394 = sbr.rel (%p392) target = $region48
        $region47: #{tpu_custom_call.1} parent=35 // pred_region
          %s395 = smul.u32 2, %s22
          %s397 = ssub.s32 512, 512
          %398 = vsyncadd %s388, %s397
          %s399 = smul.addr %s395, 2
          %s400 = smul.addr %s399, 128
          %s401 = scalar_lea.hbm %s4, %s400
          %s402 = sshll.u32 %s391, 4
          %s403 = int_to_ptr.vmem [resolvable:$true] %s402
          %408 = dma.vmem_to_hbm [thread:$0]  %s403, 512, %s401, %s388, 256, 256, 16
        $region48: #{tpu_custom_call.1} parent=35 // pred_fallthru
          _
      $region36: #{tpu_custom_call.1} parent=5 // pred_fallthru
        _
      %p409 = scmp.le.s32.totalorder 2, %s17
      // Predicated region
      $region49: #{tpu_custom_call.1} parent=5 // pred_check
        %p410 = pneg %p409
      $region50: #{tpu_custom_call.1} parent=5 // pred_check_branch
        %412 = sbr.rel (%p410) target = $region52
      $region51: #{tpu_custom_call.1} parent=5 // pred_region
        %s413 = ssub.s32 %s17, 2
        // Predicated region
        $region53: #{tpu_custom_call.1} parent=51 // pred_check
          %p414 = pneg %p135
        $region54: #{tpu_custom_call.1} parent=51 // pred_check_branch
          %416 = sbr.rel (%p414) target = $region56
        $region55: #{tpu_custom_call.1} parent=51 // pred_region
          %s417 = sand.u32 %s120, 1
          %s418 = scalar_lea.sflag [#allocation4], %s417
          %s419 = sand.u32 %s120, 1
          %s420 = smul.addr %s419, 32
          %s421 = scalar_lea.vmem [#allocation7], %s420
          %422 = dma.done %s418, 512
        $region56: #{tpu_custom_call.1} parent=51 // pred_fallthru
          _
      $region52: #{tpu_custom_call.1} parent=5 // pred_fallthru
        _
    $region6: #{tpu_custom_call.1} parent=1 // loop_footer
      %s21 = sadd.s32 1, %s17
    $region7: #{tpu_custom_call.1} parent=1 // loop_footer_branch
      %16 = sbr.rel target = $region3
    $region8: #{tpu_custom_call.1} parent=1 // loop_exit
      _
    %423 = vsyncpa [#allocation3], 1
    %s424 = scalar_lea.sflag [#allocation3], 1
    %425 = vsyncpa %s424, 1
    %426 = vsyncpa [#allocation6], 1
    %427 = vsyncpa [#allocation4], 1
    %s428 = scalar_lea.sflag [#allocation4], 1
    %429 = vsyncpa %s428, 1

</llo_original>
